<compile_context>
chip_gen: v5e
topology: v5e:2x2
jax: 0.10.0
libtpu: 0.0.40
codegen_flags: <defaults>
</compile_context>

<pallas_src>
import numpy as np
import jax
import jax.numpy as jnp
from jax.experimental import pallas as pl
from jax.experimental.pallas import tpu as pltpu

# ----------------------------- problem sizes ---------------------------------
B = 2          # batch
L = 16         # sequence length
C = 128        # in_features = out_features
HIDDEN = 512   # hidden_features

_SQRT_2_OVER_PI = 0.7978845608028654


# ------------------------------- fused kernel --------------------------------
def ffn_kernel(x_ref, w1_ref, b1_ref, w2_ref, b2_ref, o_ref):
    # fc1 : bf16 operands on the MXU, f32 accumulation
    x = x_ref[...].astype(jnp.bfloat16)                              # (M, C)
    h = jnp.dot(x, w1_ref[...], preferred_element_type=jnp.float32)  # (M, H) f32
    h = h + b1_ref[...]

    # GELU(approximate='tanh') — keep in f32 (no bf16 VPU/EUP on v5e)
    inner = _SQRT_2_OVER_PI * h * (1.0 + 0.044715 * (h * h))
    g = h * (0.5 + 0.5 * jnp.tanh(inner))

    # fc2 : bf16 operands, f32 accumulation
    o_ref[...] = (
        jnp.dot(g.astype(jnp.bfloat16), w2_ref[...],
                preferred_element_type=jnp.float32)
        + b2_ref[...]
    )


def ffn_forward(x, w1, b1, w2, b2):
    """x: (..., C) float32.  w1: (C, H), w2: (H, C).  Biases: (1, H)/(1, C).
    Returns same shape/dtype as x."""
    orig_shape = x.shape
    c_in = orig_shape[-1]
    hidden = w1.shape[1]
    x2 = x.reshape(-1, c_in)                 # flatten batch/seq into M rows
    m = x2.shape[0]

    # bf16 weights: halve weight DMA + resident VMEM; accumulation stays f32.
    w1b = w1.astype(jnp.bfloat16)
    w2b = w2.astype(jnp.bfloat16)

    cost = pl.CostEstimate(
        flops=2 * m * (c_in * hidden + hidden * c_in),
        transcendentals=m * hidden,
        bytes_accessed=(x2.size * 4 + w1b.size * 2 + b1.size * 4
                        + w2b.size * 2 + b2.size * 4 + m * c_in * 4),
    )

    vmem = pl.BlockSpec(memory_space=pltpu.MemorySpace.VMEM)
    out = pl.pallas_call(
        ffn_kernel,
        out_shape=jax.ShapeDtypeStruct((m, c_in), jnp.float32),
        in_specs=[vmem, vmem, vmem, vmem, vmem],   # whole operands, single-buffered
        out_specs=vmem,
        cost_estimate=cost,
    )(x2, w1b, b1, w2b, b2)

    return out.reshape(orig_shape)


# ---------------------------- pure-JAX reference ------------------------------
def reference(x, w1, b1, w2, b2):
    h = x @ w1 + b1[0]
    g = jax.nn.gelu(h, approximate=True)     # tanh approximation == nn.GELU('tanh')
    return g @ w2 + b2[0]


if __name__ == "__main__":
    key = jax.random.PRNGKey(0)
    k0, k1, k2, k3, k4 = jax.random.split(key, 5)

    x = jax.random.normal(k0, (B, L, C), jnp.float32)

    # fc1: Linear(C -> HIDDEN), fc2: Linear(HIDDEN -> C); stored as (in, out)
    w1 = 0.02 * jax.random.normal(k1, (C, HIDDEN), jnp.float32)
    b1 = 0.02 * jax.random.normal(k2, (1, HIDDEN), jnp.float32)
    w2 = 0.02 * jax.random.normal(k3, (HIDDEN, C), jnp.float32)
    b2 = 0.02 * jax.random.normal(k4, (1, C), jnp.float32)

    fwd = jax.jit(ffn_forward)
    out = jax.block_until_ready(fwd(x, w1, b1, w2, b2))

    ref = reference(x, w1, b1, w2, b2)
    assert out.shape == (B, L, C)
    # bf16 matmul operands (f32 accumulation) -> looser tolerance than pure f32.
    np.testing.assert_allclose(np.asarray(out), np.asarray(ref), rtol=1e-2, atol=1e-2)

    print("KERNEL_OK")
</pallas_src>

<mosaic_0001>
module attributes {stable_mosaic.version = 11 : i64} {
  func.func @ffn_kernel(%arg0: memref<32x128xf32, #tpu.memory_space<vmem>>, %arg1: memref<128x512xbf16, #tpu.memory_space<vmem>>, %arg2: memref<1x512xf32, #tpu.memory_space<vmem>>, %arg3: memref<512x128xbf16, #tpu.memory_space<vmem>>, %arg4: memref<1x128xf32, #tpu.memory_space<vmem>>, %arg5: memref<32x128xf32, #tpu.memory_space<vmem>>) attributes {dimension_semantics = [], scalar_prefetch = 0 : i64, scratch_operands = 0 : i64, tpu.core_type = #tpu.core_type<tc>} {
    %c0 = arith.constant 0 : index
    %c0_0 = arith.constant 0 : index
    %0 = vector.load %arg0[%c0, %c0_0] : memref<32x128xf32, #tpu.memory_space<vmem>>, vector<32x128xf32>
    %1 = arith.truncf %0 : vector<32x128xf32> to vector<32x128xbf16>
    %c0_1 = arith.constant 0 : index
    %c0_2 = arith.constant 0 : index
    %2 = vector.load %arg1[%c0_1, %c0_2] : memref<128x512xbf16, #tpu.memory_space<vmem>>, vector<128x512xbf16>
    %cst = arith.constant dense<0.000000e+00> : vector<32x512xf32>
    %3 = tpu.matmul %1, %2, %cst {dimension_numbers = #tpu.dot_dimension_numbers<[1], [0], [0], [1], [0, 0, 1, 1], [], []>} : vector<32x128xbf16>, vector<128x512xbf16>, vector<32x512xf32> -> vector<32x512xf32>
    %c0_3 = arith.constant 0 : index
    %c0_4 = arith.constant 0 : index
    %4 = vector.load %arg2[%c0_3, %c0_4] : memref<1x512xf32, #tpu.memory_space<vmem>>, vector<1x512xf32>
    %5 = vector.broadcast %4 : vector<1x512xf32> to vector<32x512xf32>
    %6 = arith.addf %3, %5 : vector<32x512xf32>
    %cst_5 = arith.constant 0.797884583 : f32
    %7 = vector.broadcast %cst_5 : f32 to vector<32x512xf32>
    %8 = arith.mulf %7, %6 : vector<32x512xf32>
    %9 = arith.mulf %6, %6 : vector<32x512xf32>
    %cst_6 = arith.constant 4.471500e-02 : f32
    %10 = vector.broadcast %cst_6 : f32 to vector<32x512xf32>
    %11 = arith.mulf %10, %9 : vector<32x512xf32>
    %cst_7 = arith.constant 1.000000e+00 : f32
    %12 = vector.broadcast %cst_7 : f32 to vector<32x512xf32>
    %13 = arith.addf %12, %11 : vector<32x512xf32>
    %14 = arith.mulf %8, %13 : vector<32x512xf32>
    %15 = math.tanh %14 : vector<32x512xf32>
    %cst_8 = arith.constant 5.000000e-01 : f32
    %16 = vector.broadcast %cst_8 : f32 to vector<32x512xf32>
    %17 = arith.mulf %16, %15 : vector<32x512xf32>
    %cst_9 = arith.constant 5.000000e-01 : f32
    %18 = vector.broadcast %cst_9 : f32 to vector<32x512xf32>
    %19 = arith.addf %18, %17 : vector<32x512xf32>
    %20 = arith.mulf %6, %19 : vector<32x512xf32>
    %21 = arith.truncf %20 : vector<32x512xf32> to vector<32x512xbf16>
    %c0_10 = arith.constant 0 : index
    %c0_11 = arith.constant 0 : index
    %22 = vector.load %arg3[%c0_10, %c0_11] : memref<512x128xbf16, #tpu.memory_space<vmem>>, vector<512x128xbf16>
    %cst_12 = arith.constant dense<0.000000e+00> : vector<32x128xf32>
    %23 = tpu.matmul %21, %22, %cst_12 {dimension_numbers = #tpu.dot_dimension_numbers<[1], [0], [0], [1], [0, 0, 1, 1], [], []>} : vector<32x512xbf16>, vector<512x128xbf16>, vector<32x128xf32> -> vector<32x128xf32>
    %c0_13 = arith.constant 0 : index
    %c0_14 = arith.constant 0 : index
    %24 = vector.load %arg4[%c0_13, %c0_14] : memref<1x128xf32, #tpu.memory_space<vmem>>, vector<1x128xf32>
    %25 = vector.broadcast %24 : vector<1x128xf32> to vector<32x128xf32>
    %26 = arith.addf %23, %25 : vector<32x128xf32>
    %c0_15 = arith.constant 0 : index
    %c0_16 = arith.constant 0 : index
    %27 = vector.load %arg5[%c0_15, %c0_16] : memref<32x128xf32, #tpu.memory_space<vmem>>, vector<32x128xf32>
    tpu.vector_store %arg5[%c0_15, %c0_16], %26 {strides = array<i32>} : memref<32x128xf32, #tpu.memory_space<vmem>>, vector<32x128xf32>,
    return
  }
}

</mosaic_0001>

<llo_original>
// kernel: ffn_forward.1
$region0: #{ffn_forward.1}
  #allocation0 [shape = 'u32[]', space=smem, size = 0x4, offset = 0x4, fixed_abs, tag = 'smem constant byte address 0x4 - core index']
  #allocation1 [shape = 'u32[72,128]{1,0:T(1,128)}', space=vmem, size = 0x9000, scoped, tag = 'internal scratch']
  %s0 = inlined_call_operand.vmem [shape: f32[32,128], index: 0, kind: input, shape index: {}]
  %s1 = inlined_call_operand.vmem [shape: bf16[128,512], index: 1, kind: input, shape index: {}]
  %s2 = inlined_call_operand.vmem [shape: f32[1,512], index: 2, kind: input, shape index: {}]
  %s3 = inlined_call_operand.vmem [shape: bf16[512,128], index: 3, kind: input, shape index: {}]
  %s4 = inlined_call_operand.vmem [shape: f32[1,128], index: 4, kind: input, shape index: {}]
  %s5 = inlined_call_operand.hbm [shape: f32[32,128], index: 5, kind: output, shape index: {}]
  %s6 = sld [smem:[#allocation0]]
  $region30: #{ffn_forward.1} parent=0
    _
  %s8 = ssub.s32 1, %s6
  %s9 = scalar_select 0, %s8, %s6
  $region1: #{ffn_forward.1} parent=0
    #allocation2 [shape = 'u8[16384]{0}', space=vmem, size = 0x4000, scoped, tag = 'output window, operand 0, single buffered']
    #allocation3 [shape = 's32[1]{0}', space=sflag, size = 0x4, scoped, tag = 'scoped memory for ffn_forward.1']
    %10 = vsyncpa [#allocation3], 0
    // Predicated region
    $region2: #{ffn_forward.1} parent=1 // pred_check
      _
    $region3: #{ffn_forward.1} parent=1 // pred_check_branch
      %12 = sbr.rel (0) target = $region5
    $region4: #{ffn_forward.1} parent=1 // pred_region
      _
    $region5: #{ffn_forward.1} parent=1 // pred_fallthru
      _
    // Predicated region
    $region6: #{ffn_forward.1} parent=1 // pred_check
      _
    $region7: #{ffn_forward.1} parent=1 // pred_check_branch
      %14 = sbr.rel (0) target = $region9
    $region8: #{ffn_forward.1} parent=1 // pred_region
      _
    $region9: #{ffn_forward.1} parent=1 // pred_fallthru
      _
    // Predicated region
    $region10: #{ffn_forward.1} parent=1 // pred_check
      _
    $region11: #{ffn_forward.1} parent=1 // pred_check_branch
      %16 = sbr.rel (0) target = $region13
    $region12: #{ffn_forward.1} parent=1 // pred_region
      _
    $region13: #{ffn_forward.1} parent=1 // pred_fallthru
      _
    // Predicated region
    $region14: #{ffn_forward.1} parent=1 // pred_check
      _
    $region15: #{ffn_forward.1} parent=1 // pred_check_branch
      %18 = sbr.rel (0) target = $region17
    $region16: #{ffn_forward.1} parent=1 // pred_region
      _
    $region17: #{ffn_forward.1} parent=1 // pred_fallthru
      _
    // Predicated region
    $region18: #{ffn_forward.1} parent=1 // pred_check
      _
    $region19: #{ffn_forward.1} parent=1 // pred_check_branch
      %20 = sbr.rel (0) target = $region21
    $region20: #{ffn_forward.1} parent=1 // pred_region
      _
    $region21: #{ffn_forward.1} parent=1 // pred_fallthru
      _
    %v21 = vld [vmem:[%s0] sm:$0xff]
    %v22 = vld [vmem:[%s0 + $0x8] sm:$0xff]
    %v23 = vld [vmem:[%s0 + $0x10] sm:$0xff]
    %v24 = vld [vmem:[%s0 + $0x18] sm:$0xff]
    %v25 = vpack.c.bf16 %v22, %v21
    %v26 = vpack.c.bf16 %v24, %v23
    %v27 = vld [vmem:[%s1] sm:$0xff]
    %v28 = vld [vmem:[%s1 + $0x8] sm:$0xff]
    %v29 = vld [vmem:[%s1 + $0x10] sm:$0xff]
    %v30 = vld [vmem:[%s1 + $0x18] sm:$0xff]
    %v31 = vld [vmem:[%s1 + $0x20] sm:$0xff]
    %v32 = vld [vmem:[%s1 + $0x28] sm:$0xff]
    %v33 = vld [vmem:[%s1 + $0x30] sm:$0xff]
    %v34 = vld [vmem:[%s1 + $0x38] sm:$0xff]
    %v35 = vld [vmem:[%s1 + $0x40] sm:$0xff]
    %v36 = vld [vmem:[%s1 + $0x48] sm:$0xff]
    %v37 = vld [vmem:[%s1 + $0x50] sm:$0xff]
    %v38 = vld [vmem:[%s1 + $0x58] sm:$0xff]
    %v39 = vld [vmem:[%s1 + $0x60] sm:$0xff]
    %v40 = vld [vmem:[%s1 + $0x68] sm:$0xff]
    %v41 = vld [vmem:[%s1 + $0x70] sm:$0xff]
    %v42 = vld [vmem:[%s1 + $0x78] sm:$0xff]
    %v43 = vld [vmem:[%s1 + $0x80] sm:$0xff]
    %v44 = vld [vmem:[%s1 + $0x88] sm:$0xff]
    %v45 = vld [vmem:[%s1 + $0x90] sm:$0xff]
    %v46 = vld [vmem:[%s1 + $0x98] sm:$0xff]
    %v47 = vld [vmem:[%s1 + $0xa0] sm:$0xff]
    %v48 = vld [vmem:[%s1 + $0xa8] sm:$0xff]
    %v49 = vld [vmem:[%s1 + $0xb0] sm:$0xff]
    %v50 = vld [vmem:[%s1 + $0xb8] sm:$0xff]
    %v51 = vld [vmem:[%s1 + $0xc0] sm:$0xff]
    %v52 = vld [vmem:[%s1 + $0xc8] sm:$0xff]
    %v53 = vld [vmem:[%s1 + $0xd0] sm:$0xff]
    %v54 = vld [vmem:[%s1 + $0xd8] sm:$0xff]
    %v55 = vld [vmem:[%s1 + $0xe0] sm:$0xff]
    %v56 = vld [vmem:[%s1 + $0xe8] sm:$0xff]
    %v57 = vld [vmem:[%s1 + $0xf0] sm:$0xff]
    %v58 = vld [vmem:[%s1 + $0xf8] sm:$0xff]
    %v59 = vld [vmem:[%s2] sm:$0xf]
    %v61 = vperm.slane %v59, 0
    %v62 = vperm.slane %v59, 1
    %v63 = vperm.slane %v59, 2
    %v64 = vperm.slane %v59, 3
    %v101 = vunpack.c.l.b16 %v27
    %v102 = vunpack.c.h.b16 %v27
    %v103 = vunpack.c.l.b16 %v28
    %v104 = vunpack.c.h.b16 %v28
    %v105 = vunpack.c.l.b16 %v29
    %v106 = vunpack.c.h.b16 %v29
    %v107 = vunpack.c.l.b16 %v30
    %v108 = vunpack.c.h.b16 %v30
    %v109 = vunpack.c.l.b16 %v31
    %v110 = vunpack.c.h.b16 %v31
    %v111 = vunpack.c.l.b16 %v32
    %v112 = vunpack.c.h.b16 %v32
    %v113 = vunpack.c.l.b16 %v33
    %v114 = vunpack.c.h.b16 %v33
    %v115 = vunpack.c.l.b16 %v34
    %v116 = vunpack.c.h.b16 %v34
    %v117 = vunpack.c.l.b16 %v35
    %v118 = vunpack.c.h.b16 %v35
    %v119 = vunpack.c.l.b16 %v36
    %v120 = vunpack.c.h.b16 %v36
    %v121 = vunpack.c.l.b16 %v37
    %v122 = vunpack.c.h.b16 %v37
    %v123 = vunpack.c.l.b16 %v38
    %v124 = vunpack.c.h.b16 %v38
    %v125 = vunpack.c.l.b16 %v39
    %v126 = vunpack.c.h.b16 %v39
    %v127 = vunpack.c.l.b16 %v40
    %v128 = vunpack.c.h.b16 %v40
    %v129 = vunpack.c.l.b16 %v41
    %v130 = vunpack.c.h.b16 %v41
    %v131 = vunpack.c.l.b16 %v42
    %v132 = vunpack.c.h.b16 %v42
    %v133 = vunpack.c.l.b16 %v43
    %v134 = vunpack.c.h.b16 %v43
    %v135 = vunpack.c.l.b16 %v44
    %v136 = vunpack.c.h.b16 %v44
    %v137 = vunpack.c.l.b16 %v45
    %v138 = vunpack.c.h.b16 %v45
    %v139 = vunpack.c.l.b16 %v46
    %v140 = vunpack.c.h.b16 %v46
    %v141 = vunpack.c.l.b16 %v47
    %v142 = vunpack.c.h.b16 %v47
    %v143 = vunpack.c.l.b16 %v48
    %v144 = vunpack.c.h.b16 %v48
    %v145 = vunpack.c.l.b16 %v49
    %v146 = vunpack.c.h.b16 %v49
    %v147 = vunpack.c.l.b16 %v50
    %v148 = vunpack.c.h.b16 %v50
    %v149 = vunpack.c.l.b16 %v51
    %v150 = vunpack.c.h.b16 %v51
    %v151 = vunpack.c.l.b16 %v52
    %v152 = vunpack.c.h.b16 %v52
    %v153 = vunpack.c.l.b16 %v53
    %v154 = vunpack.c.h.b16 %v53
    %v155 = vunpack.c.l.b16 %v54
    %v156 = vunpack.c.h.b16 %v54
    %v157 = vunpack.c.l.b16 %v55
    %v158 = vunpack.c.h.b16 %v55
    %v159 = vunpack.c.l.b16 %v56
    %v160 = vunpack.c.h.b16 %v56
    %v161 = vunpack.c.l.b16 %v57
    %v162 = vunpack.c.h.b16 %v57
    %v163 = vunpack.c.l.b16 %v58
    %v164 = vunpack.c.h.b16 %v58
    %v165 = vpack.c.b16 %v105, %v101
    %v166 = vpack.c.b16 %v106, %v102
    %v167 = vpack.c.b16 %v107, %v103
    %v168 = vpack.c.b16 %v108, %v104
    %v169 = vpack.c.b16 %v113, %v109
    %v170 = vpack.c.b16 %v114, %v110
    %v171 = vpack.c.b16 %v115, %v111
    %v172 = vpack.c.b16 %v116, %v112
    %v173 = vpack.c.b16 %v121, %v117
    %v174 = vpack.c.b16 %v122, %v118
    %v175 = vpack.c.b16 %v123, %v119
    %v176 = vpack.c.b16 %v124, %v120
    %v177 = vpack.c.b16 %v129, %v125
    %v178 = vpack.c.b16 %v130, %v126
    %v179 = vpack.c.b16 %v131, %v127
    %v180 = vpack.c.b16 %v132, %v128
    %v181 = vpack.c.b16 %v137, %v133
    %v182 = vpack.c.b16 %v138, %v134
    %v183 = vpack.c.b16 %v139, %v135
    %v184 = vpack.c.b16 %v140, %v136
    %v185 = vpack.c.b16 %v145, %v141
    %v186 = vpack.c.b16 %v146, %v142
    %v187 = vpack.c.b16 %v147, %v143
    %v188 = vpack.c.b16 %v148, %v144
    %v189 = vpack.c.b16 %v153, %v149
    %v190 = vpack.c.b16 %v154, %v150
    %v191 = vpack.c.b16 %v155, %v151
    %v192 = vpack.c.b16 %v156, %v152
    %v193 = vpack.c.b16 %v161, %v157
    %v194 = vpack.c.b16 %v162, %v158
    %v195 = vpack.c.b16 %v163, %v159
    %v196 = vpack.c.b16 %v164, %v160
    %229 = vmatpush.bf16.msra.mxu0 %v193
    %230 = vmatpush.bf16.msra.mxu0 %v189
    %231 = vmatpush.bf16.msra.mxu0 %v185
    %232 = vmatpush.bf16.msra.mxu0 %v181
    %233 = vmatpush.bf16.msra.mxu0 %v177
    %234 = vmatpush.bf16.msra.mxu0 %v173
    %235 = vmatpush.bf16.msra.mxu0 %v169
    %236 = vmatpush.bf16.msra.mxu0 %v165
    %237 = vmatmul.bf16.gmra.mxu0 %v25
    %v238 = vpop.f32.mrf.mxu0
    %v239 = vadd.f32 %v61, %v238
    %v240 = vpop.f32.mrf.mxu0
    %v241 = vadd.f32 %v61, %v240
    %242 = vmatmul.bf16.gmra.mxu0 %v26
    %v243 = vpop.f32.mrf.mxu0
    %v244 = vadd.f32 %v61, %v243
    %v245 = vpop.f32.mrf.mxu0
    %v246 = vadd.f32 %v61, %v245
    %247 = vdwg.mxu0
    %248 = vmatpush.bf16.msra.mxu0 %v194
    %249 = vmatpush.bf16.msra.mxu0 %v190
    %250 = vmatpush.bf16.msra.mxu0 %v186
    %251 = vmatpush.bf16.msra.mxu0 %v182
    %252 = vmatpush.bf16.msra.mxu0 %v178
    %253 = vmatpush.bf16.msra.mxu0 %v174
    %254 = vmatpush.bf16.msra.mxu0 %v170
    %255 = vmatpush.bf16.msra.mxu0 %v166
    %256 = vmatmul.bf16.gmra.mxu0 %v25
    %v257 = vpop.f32.mrf.mxu0
    %v258 = vadd.f32 %v62, %v257
    %v259 = vpop.f32.mrf.mxu0
    %v260 = vadd.f32 %v62, %v259
    %261 = vmatmul.bf16.gmra.mxu0 %v26
    %v262 = vpop.f32.mrf.mxu0
    %v263 = vadd.f32 %v62, %v262
    %v264 = vpop.f32.mrf.mxu0
    %v265 = vadd.f32 %v62, %v264
    %266 = vdwg.mxu0
    %267 = vmatpush.bf16.msra.mxu0 %v195
    %268 = vmatpush.bf16.msra.mxu0 %v191
    %269 = vmatpush.bf16.msra.mxu0 %v187
    %270 = vmatpush.bf16.msra.mxu0 %v183
    %271 = vmatpush.bf16.msra.mxu0 %v179
    %272 = vmatpush.bf16.msra.mxu0 %v175
    %273 = vmatpush.bf16.msra.mxu0 %v171
    %274 = vmatpush.bf16.msra.mxu0 %v167
    %275 = vmatmul.bf16.gmra.mxu0 %v25
    %v276 = vpop.f32.mrf.mxu0
    %v277 = vadd.f32 %v63, %v276
    %v278 = vpop.f32.mrf.mxu0
    %v279 = vadd.f32 %v63, %v278
    %280 = vmatmul.bf16.gmra.mxu0 %v26
    %v281 = vpop.f32.mrf.mxu0
    %v282 = vadd.f32 %v63, %v281
    %v283 = vpop.f32.mrf.mxu0
    %v284 = vadd.f32 %v63, %v283
    %285 = vdwg.mxu0
    %286 = vmatpush.bf16.msra.mxu0 %v196
    %287 = vmatpush.bf16.msra.mxu0 %v192
    %288 = vmatpush.bf16.msra.mxu0 %v188
    %289 = vmatpush.bf16.msra.mxu0 %v184
    %290 = vmatpush.bf16.msra.mxu0 %v180
    %291 = vmatpush.bf16.msra.mxu0 %v176
    %292 = vmatpush.bf16.msra.mxu0 %v172
    %293 = vmatpush.bf16.msra.mxu0 %v168
    %294 = vmatmul.bf16.gmra.mxu0 %v25
    %v295 = vpop.f32.mrf.mxu0
    %v296 = vadd.f32 %v64, %v295
    %v297 = vpop.f32.mrf.mxu0
    %v298 = vadd.f32 %v64, %v297
    %299 = vmatmul.bf16.gmra.mxu0 %v26
    %v300 = vpop.f32.mrf.mxu0
    %v301 = vadd.f32 %v64, %v300
    %v302 = vpop.f32.mrf.mxu0
    %v303 = vadd.f32 %v64, %v302
    %304 = vdwg.mxu0
    %v305 = vmul.f32 %v239, 0.7978846
    %v306 = vmul.f32 %v258, 0.7978846
    %v307 = vmul.f32 %v277, 0.7978846
    %v308 = vmul.f32 %v296, 0.7978846
    %v309 = vmul.f32 %v241, 0.7978846
    %v310 = vmul.f32 %v260, 0.7978846
    %v311 = vmul.f32 %v279, 0.7978846
    %v312 = vmul.f32 %v298, 0.7978846
    %v313 = vmul.f32 %v244, 0.7978846
    %v314 = vmul.f32 %v263, 0.7978846
    %v315 = vmul.f32 %v282, 0.7978846
    %v316 = vmul.f32 %v301, 0.7978846
    %v317 = vmul.f32 %v246, 0.7978846
    %v318 = vmul.f32 %v265, 0.7978846
    %v319 = vmul.f32 %v284, 0.7978846
    %v320 = vmul.f32 %v303, 0.7978846
    %v321 = vmul.f32 %v239, %v239
    %v322 = vmul.f32 %v258, %v258
    %v323 = vmul.f32 %v277, %v277
    %v324 = vmul.f32 %v296, %v296
    %v325 = vmul.f32 %v241, %v241
    %v326 = vmul.f32 %v260, %v260
    %v327 = vmul.f32 %v279, %v279
    %v328 = vmul.f32 %v298, %v298
    %v329 = vmul.f32 %v244, %v244
    %v330 = vmul.f32 %v263, %v263
    %v331 = vmul.f32 %v282, %v282
    %v332 = vmul.f32 %v301, %v301
    %v333 = vmul.f32 %v246, %v246
    %v334 = vmul.f32 %v265, %v265
    %v335 = vmul.f32 %v284, %v284
    %v336 = vmul.f32 %v303, %v303
    %v337 = vmul.f32 %v321, 0.044715
    %v338 = vmul.f32 %v322, 0.044715
    %v339 = vmul.f32 %v323, 0.044715
    %v340 = vmul.f32 %v324, 0.044715
    %v341 = vmul.f32 %v325, 0.044715
    %v342 = vmul.f32 %v326, 0.044715
    %v343 = vmul.f32 %v327, 0.044715
    %v344 = vmul.f32 %v328, 0.044715
    %v345 = vmul.f32 %v329, 0.044715
    %v346 = vmul.f32 %v330, 0.044715
    %v347 = vmul.f32 %v331, 0.044715
    %v348 = vmul.f32 %v332, 0.044715
    %v349 = vmul.f32 %v333, 0.044715
    %v350 = vmul.f32 %v334, 0.044715
    %v351 = vmul.f32 %v335, 0.044715
    %v352 = vmul.f32 %v336, 0.044715
    %v353 = vadd.f32 %v337, 1.0
    %v354 = vadd.f32 %v338, 1.0
    %v355 = vadd.f32 %v339, 1.0
    %v356 = vadd.f32 %v340, 1.0
    %v357 = vadd.f32 %v341, 1.0
    %v358 = vadd.f32 %v342, 1.0
    %v359 = vadd.f32 %v343, 1.0
    %v360 = vadd.f32 %v344, 1.0
    %v361 = vadd.f32 %v345, 1.0
    %v362 = vadd.f32 %v346, 1.0
    %v363 = vadd.f32 %v347, 1.0
    %v364 = vadd.f32 %v348, 1.0
    %v365 = vadd.f32 %v349, 1.0
    %v366 = vadd.f32 %v350, 1.0
    %v367 = vadd.f32 %v351, 1.0
    %v368 = vadd.f32 %v352, 1.0
    %v369 = vmul.f32 %v305, %v353
    %v370 = vmul.f32 %v306, %v354
    %v371 = vmul.f32 %v307, %v355
    %v372 = vmul.f32 %v308, %v356
    %v373 = vmul.f32 %v309, %v357
    %v374 = vmul.f32 %v310, %v358
    %v375 = vmul.f32 %v311, %v359
    %v376 = vmul.f32 %v312, %v360
    %v377 = vmul.f32 %v313, %v361
    %v378 = vmul.f32 %v314, %v362
    %v379 = vmul.f32 %v315, %v363
    %v380 = vmul.f32 %v316, %v364
    %v381 = vmul.f32 %v317, %v365
    %v382 = vmul.f32 %v318, %v366
    %v383 = vmul.f32 %v319, %v367
    %v384 = vmul.f32 %v320, %v368
    %v385 = vtanh.pop %v369
    %v386 = vtanh.pop %v370
    %v387 = vtanh.pop %v371
    %v388 = vtanh.pop %v372
    %v389 = vtanh.pop %v373
    %v390 = vtanh.pop %v374
    %v391 = vtanh.pop %v375
    %v392 = vtanh.pop %v376
    %v393 = vtanh.pop %v377
    %v394 = vtanh.pop %v378
    %v395 = vtanh.pop %v379
    %v396 = vtanh.pop %v380
    %v397 = vtanh.pop %v381
    %v398 = vtanh.pop %v382
    %v399 = vtanh.pop %v383
    %v400 = vtanh.pop %v384
    %v401 = vmul.f32 %v385, 0.5
    %v402 = vmul.f32 %v386, 0.5
    %v403 = vmul.f32 %v387, 0.5
    %v404 = vmul.f32 %v388, 0.5
    %v405 = vmul.f32 %v389, 0.5
    %v406 = vmul.f32 %v390, 0.5
    %v407 = vmul.f32 %v391, 0.5
    %v408 = vmul.f32 %v392, 0.5
    %v409 = vmul.f32 %v393, 0.5
    %v410 = vmul.f32 %v394, 0.5
    %v411 = vmul.f32 %v395, 0.5
    %v412 = vmul.f32 %v396, 0.5
    %v413 = vmul.f32 %v397, 0.5
    %v414 = vmul.f32 %v398, 0.5
    %v415 = vmul.f32 %v399, 0.5
    %v416 = vmul.f32 %v400, 0.5
    %v417 = vadd.f32 %v401, 0.5
    %v418 = vadd.f32 %v402, 0.5
    %v419 = vadd.f32 %v403, 0.5
    %v420 = vadd.f32 %v404, 0.5
    %v421 = vadd.f32 %v405, 0.5
    %v422 = vadd.f32 %v406, 0.5
    %v423 = vadd.f32 %v407, 0.5
    %v424 = vadd.f32 %v408, 0.5
    %v425 = vadd.f32 %v409, 0.5
    %v426 = vadd.f32 %v410, 0.5
    %v427 = vadd.f32 %v411, 0.5
    %v428 = vadd.f32 %v412, 0.5
    %v429 = vadd.f32 %v413, 0.5
    %v430 = vadd.f32 %v414, 0.5
    %v431 = vadd.f32 %v415, 0.5
    %v432 = vadd.f32 %v416, 0.5
    %v433 = vmul.f32 %v239, %v417
    %v434 = vmul.f32 %v258, %v418
    %v435 = vmul.f32 %v277, %v419
    %v436 = vmul.f32 %v296, %v420
    %v437 = vmul.f32 %v241, %v421
    %v438 = vmul.f32 %v260, %v422
    %v439 = vmul.f32 %v279, %v423
    %v440 = vmul.f32 %v298, %v424
    %v441 = vmul.f32 %v244, %v425
    %v442 = vmul.f32 %v263, %v426
    %v443 = vmul.f32 %v282, %v427
    %v444 = vmul.f32 %v301, %v428
    %v445 = vmul.f32 %v246, %v429
    %v446 = vmul.f32 %v265, %v430
    %v447 = vmul.f32 %v284, %v431
    %v448 = vmul.f32 %v303, %v432
    %v449 = vpack.c.bf16 %v437, %v433
    %v450 = vpack.c.bf16 %v438, %v434
    %v451 = vpack.c.bf16 %v439, %v435
    %v452 = vpack.c.bf16 %v440, %v436
    %v453 = vpack.c.bf16 %v445, %v441
    %v454 = vpack.c.bf16 %v446, %v442
    %v455 = vpack.c.bf16 %v447, %v443
    %v456 = vpack.c.bf16 %v448, %v444
    %v457 = vld [vmem:[%s3] sm:$0xf]
    %v458 = vld [vmem:[%s3 + $0x4] sm:$0xf]
    %v459 = vld [vmem:[%s3 + $0x8] sm:$0xf]
    %v460 = vld [vmem:[%s3 + $0xc] sm:$0xf]
    %v461 = vld [vmem:[%s3 + $0x10] sm:$0xf]
    %v462 = vld [vmem:[%s3 + $0x14] sm:$0xf]
    %v463 = vld [vmem:[%s3 + $0x18] sm:$0xf]
    %v464 = vld [vmem:[%s3 + $0x1c] sm:$0xf]
    %v465 = vld [vmem:[%s3 + $0x20] sm:$0xf]
    %v466 = vld [vmem:[%s3 + $0x24] sm:$0xf]
    %v467 = vld [vmem:[%s3 + $0x28] sm:$0xf]
    %v468 = vld [vmem:[%s3 + $0x2c] sm:$0xf]
    %v469 = vld [vmem:[%s3 + $0x30] sm:$0xf]
    %v470 = vld [vmem:[%s3 + $0x34] sm:$0xf]
    %v471 = vld [vmem:[%s3 + $0x38] sm:$0xf]
    %v472 = vld [vmem:[%s3 + $0x3c] sm:$0xf]
    %v473 = vld [vmem:[%s3 + $0x40] sm:$0xf]
    %v474 = vld [vmem:[%s3 + $0x44] sm:$0xf]
    %v475 = vld [vmem:[%s3 + $0x48] sm:$0xf]
    %v476 = vld [vmem:[%s3 + $0x4c] sm:$0xf]
    %v477 = vld [vmem:[%s3 + $0x50] sm:$0xf]
    %v478 = vld [vmem:[%s3 + $0x54] sm:$0xf]
    %v479 = vld [vmem:[%s3 + $0x58] sm:$0xf]
    %v480 = vld [vmem:[%s3 + $0x5c] sm:$0xf]
    %v481 = vld [vmem:[%s3 + $0x60] sm:$0xf]
    %v482 = vld [vmem:[%s3 + $0x64] sm:$0xf]
    %v483 = vld [vmem:[%s3 + $0x68] sm:$0xf]
    %v484 = vld [vmem:[%s3 + $0x6c] sm:$0xf]
    %v485 = vld [vmem:[%s3 + $0x70] sm:$0xf]
    %v486 = vld [vmem:[%s3 + $0x74] sm:$0xf]
    %v487 = vld [vmem:[%s3 + $0x78] sm:$0xf]
    %v488 = vld [vmem:[%s3 + $0x7c] sm:$0xf]
    %v489 = vld [vmem:[%s3 + $0x80] sm:$0xf]
    %v490 = vld [vmem:[%s3 + $0x84] sm:$0xf]
    %v491 = vld [vmem:[%s3 + $0x88] sm:$0xf]
    %v492 = vld [vmem:[%s3 + $0x8c] sm:$0xf]
    %v493 = vld [vmem:[%s3 + $0x90] sm:$0xf]
    %v494 = vld [vmem:[%s3 + $0x94] sm:$0xf]
    %v495 = vld [vmem:[%s3 + $0x98] sm:$0xf]
    %v496 = vld [vmem:[%s3 + $0x9c] sm:$0xf]
    %v497 = vld [vmem:[%s3 + $0xa0] sm:$0xf]
    %v498 = vld [vmem:[%s3 + $0xa4] sm:$0xf]
    %v499 = vld [vmem:[%s3 + $0xa8] sm:$0xf]
    %v500 = vld [vmem:[%s3 + $0xac] sm:$0xf]
    %v501 = vld [vmem:[%s3 + $0xb0] sm:$0xf]
    %v502 = vld [vmem:[%s3 + $0xb4] sm:$0xf]
    %v503 = vld [vmem:[%s3 + $0xb8] sm:$0xf]
    %v504 = vld [vmem:[%s3 + $0xbc] sm:$0xf]
    %v505 = vld [vmem:[%s3 + $0xc0] sm:$0xf]
    %v506 = vld [vmem:[%s3 + $0xc4] sm:$0xf]
    %v507 = vld [vmem:[%s3 + $0xc8] sm:$0xf]
    %v508 = vld [vmem:[%s3 + $0xcc] sm:$0xf]
    %v509 = vld [vmem:[%s3 + $0xd0] sm:$0xf]
    %v510 = vld [vmem:[%s3 + $0xd4] sm:$0xf]
    %v511 = vld [vmem:[%s3 + $0xd8] sm:$0xf]
    %v512 = vld [vmem:[%s3 + $0xdc] sm:$0xf]
    %v513 = vld [vmem:[%s3 + $0xe0] sm:$0xf]
    %v514 = vld [vmem:[%s3 + $0xe4] sm:$0xf]
    %v515 = vld [vmem:[%s3 + $0xe8] sm:$0xf]
    %v516 = vld [vmem:[%s3 + $0xec] sm:$0xf]
    %v517 = vld [vmem:[%s3 + $0xf0] sm:$0xf]
    %v518 = vld [vmem:[%s3 + $0xf4] sm:$0xf]
    %v519 = vld [vmem:[%s3 + $0xf8] sm:$0xf]
    %v520 = vld [vmem:[%s3 + $0xfc] sm:$0xf]
    %v521 = vld [vmem:[%s4] sm:$0x1]
    %v523 = vperm.slane %v521, 0
    %v589 = vunpack.c.l.b16 %v457
    %v590 = vunpack.c.l.b16 %v458
    %v591 = vunpack.c.l.b16 %v459
    %v592 = vunpack.c.l.b16 %v460
    %v593 = vunpack.c.l.b16 %v461
    %v594 = vunpack.c.l.b16 %v462
    %v595 = vunpack.c.l.b16 %v463
    %v596 = vunpack.c.l.b16 %v464
    %v597 = vunpack.c.l.b16 %v465
    %v598 = vunpack.c.l.b16 %v466
    %v599 = vunpack.c.l.b16 %v467
    %v600 = vunpack.c.l.b16 %v468
    %v601 = vunpack.c.l.b16 %v469
    %v602 = vunpack.c.l.b16 %v470
    %v603 = vunpack.c.l.b16 %v471
    %v604 = vunpack.c.l.b16 %v472
    %v605 = vunpack.c.l.b16 %v473
    %v606 = vunpack.c.l.b16 %v474
    %v607 = vunpack.c.l.b16 %v475
    %v608 = vunpack.c.l.b16 %v476
    %v609 = vunpack.c.l.b16 %v477
    %v610 = vunpack.c.l.b16 %v478
    %v611 = vunpack.c.l.b16 %v479
    %v612 = vunpack.c.l.b16 %v480
    %v613 = vunpack.c.l.b16 %v481
    %v614 = vunpack.c.l.b16 %v482
    %v615 = vunpack.c.l.b16 %v483
    %v616 = vunpack.c.l.b16 %v484
    %v617 = vunpack.c.l.b16 %v485
    %v618 = vunpack.c.l.b16 %v486
    %v619 = vunpack.c.l.b16 %v487
    %v620 = vunpack.c.l.b16 %v488
    %v621 = vunpack.c.l.b16 %v489
    %v622 = vunpack.c.l.b16 %v490
    %v623 = vunpack.c.l.b16 %v491
    %v624 = vunpack.c.l.b16 %v492
    %v625 = vunpack.c.l.b16 %v493
    %v626 = vunpack.c.l.b16 %v494
    %v627 = vunpack.c.l.b16 %v495
    %v628 = vunpack.c.l.b16 %v496
    %v629 = vunpack.c.l.b16 %v497
    %v630 = vunpack.c.l.b16 %v498
    %v631 = vunpack.c.l.b16 %v499
    %v632 = vunpack.c.l.b16 %v500
    %v633 = vunpack.c.l.b16 %v501
    %v634 = vunpack.c.l.b16 %v502
    %v635 = vunpack.c.l.b16 %v503
    %v636 = vunpack.c.l.b16 %v504
    %v637 = vunpack.c.l.b16 %v505
    %v638 = vunpack.c.l.b16 %v506
    %v639 = vunpack.c.l.b16 %v507
    %v640 = vunpack.c.l.b16 %v508
    %v641 = vunpack.c.l.b16 %v509
    %v642 = vunpack.c.l.b16 %v510
    %v643 = vunpack.c.l.b16 %v511
    %v644 = vunpack.c.l.b16 %v512
    %v645 = vunpack.c.l.b16 %v513
    %v646 = vunpack.c.l.b16 %v514
    %v647 = vunpack.c.l.b16 %v515
    %v648 = vunpack.c.l.b16 %v516
    %v649 = vunpack.c.l.b16 %v517
    %v650 = vunpack.c.l.b16 %v518
    %v651 = vunpack.c.l.b16 %v519
    %v652 = vunpack.c.l.b16 %v520
    %v653 = vpack.c.b16 %v590, %v589
    %v654 = vpack.c.b16 %v592, %v591
    %v655 = vpack.c.b16 %v594, %v593
    %v656 = vpack.c.b16 %v596, %v595
    %v657 = vpack.c.b16 %v598, %v597
    %v658 = vpack.c.b16 %v600, %v599
    %v659 = vpack.c.b16 %v602, %v601
    %v660 = vpack.c.b16 %v604, %v603
    %v661 = vpack.c.b16 %v606, %v605
    %v662 = vpack.c.b16 %v608, %v607
    %v663 = vpack.c.b16 %v610, %v609
    %v664 = vpack.c.b16 %v612, %v611
    %v665 = vpack.c.b16 %v614, %v613
    %v666 = vpack.c.b16 %v616, %v615
    %v667 = vpack.c.b16 %v618, %v617
    %v668 = vpack.c.b16 %v620, %v619
    %v669 = vpack.c.b16 %v622, %v621
    %v670 = vpack.c.b16 %v624, %v623
    %v671 = vpack.c.b16 %v626, %v625
    %v672 = vpack.c.b16 %v628, %v627
    %v673 = vpack.c.b16 %v630, %v629
    %v674 = vpack.c.b16 %v632, %v631
    %v675 = vpack.c.b16 %v634, %v633
    %v676 = vpack.c.b16 %v636, %v635
    %v677 = vpack.c.b16 %v638, %v637
    %v678 = vpack.c.b16 %v640, %v639
    %v679 = vpack.c.b16 %v642, %v641
    %v680 = vpack.c.b16 %v644, %v643
    %v681 = vpack.c.b16 %v646, %v645
    %v682 = vpack.c.b16 %v648, %v647
    %v683 = vpack.c.b16 %v650, %v649
    %v684 = vpack.c.b16 %v652, %v651
    %717 = vmatpush.bf16.msra.mxu0 %v660
    %718 = vmatpush.bf16.msra.mxu0 %v659
    %719 = vmatpush.bf16.msra.mxu0 %v658
    %720 = vmatpush.bf16.msra.mxu0 %v657
    %721 = vmatpush.bf16.msra.mxu0 %v656
    %722 = vmatpush.bf16.msra.mxu0 %v655
    %723 = vmatpush.bf16.msra.mxu0 %v654
    %724 = vmatpush.bf16.msra.mxu0 %v653
    %725 = vmatmul.bf16.gmra.mxu0 %v449
    %v726 = vpop.f32.mrf.mxu0
    %v727 = vadd.f32 %v523, %v726
    %v728 = vpop.f32.mrf.mxu0
    %v729 = vadd.f32 %v523, %v728
    %730 = vmatmul.bf16.gmra.mxu0 %v453
    %v731 = vpop.f32.mrf.mxu0
    %v732 = vadd.f32 %v523, %v731
    %v733 = vpop.f32.mrf.mxu0
    %v734 = vadd.f32 %v523, %v733
    %735 = vdwg.mxu0
    %736 = vmatpush.bf16.msra.mxu0 %v668
    %737 = vmatpush.bf16.msra.mxu0 %v667
    %738 = vmatpush.bf16.msra.mxu0 %v666
    %739 = vmatpush.bf16.msra.mxu0 %v665
    %740 = vmatpush.bf16.msra.mxu0 %v664
    %741 = vmatpush.bf16.msra.mxu0 %v663
    %742 = vmatpush.bf16.msra.mxu0 %v662
    %743 = vmatpush.bf16.msra.mxu0 %v661
    %744 = vmatmul.bf16.gmra.mxu0 %v450
    %v745 = vpop.f32.mrf.mxu0
    %v746 = vadd.f32 %v727, %v745
    %v747 = vpop.f32.mrf.mxu0
    %v748 = vadd.f32 %v729, %v747
    %749 = vmatmul.bf16.gmra.mxu0 %v454
    %v750 = vpop.f32.mrf.mxu0
    %v751 = vadd.f32 %v732, %v750
    %v752 = vpop.f32.mrf.mxu0
    %v753 = vadd.f32 %v734, %v752
    %754 = vdwg.mxu0
    %755 = vmatpush.bf16.msra.mxu0 %v676
    %756 = vmatpush.bf16.msra.mxu0 %v675
    %757 = vmatpush.bf16.msra.mxu0 %v674
    %758 = vmatpush.bf16.msra.mxu0 %v673
    %759 = vmatpush.bf16.msra.mxu0 %v672
    %760 = vmatpush.bf16.msra.mxu0 %v671
    %761 = vmatpush.bf16.msra.mxu0 %v670
    %762 = vmatpush.bf16.msra.mxu0 %v669
    %763 = vmatmul.bf16.gmra.mxu0 %v451
    %v764 = vpop.f32.mrf.mxu0
    %v765 = vadd.f32 %v746, %v764
    %v766 = vpop.f32.mrf.mxu0
    %v767 = vadd.f32 %v748, %v766
    %768 = vmatmul.bf16.gmra.mxu0 %v455
    %v769 = vpop.f32.mrf.mxu0
    %v770 = vadd.f32 %v751, %v769
    %v771 = vpop.f32.mrf.mxu0
    %v772 = vadd.f32 %v753, %v771
    %773 = vdwg.mxu0
    %774 = vmatpush.bf16.msra.mxu0 %v684
    %775 = vmatpush.bf16.msra.mxu0 %v683
    %776 = vmatpush.bf16.msra.mxu0 %v682
    %777 = vmatpush.bf16.msra.mxu0 %v681
    %778 = vmatpush.bf16.msra.mxu0 %v680
    %779 = vmatpush.bf16.msra.mxu0 %v679
    %780 = vmatpush.bf16.msra.mxu0 %v678
    %781 = vmatpush.bf16.msra.mxu0 %v677
    %782 = vmatmul.bf16.gmra.mxu0 %v452
    %v783 = vpop.f32.mrf.mxu0
    %v784 = vadd.f32 %v765, %v783
    %v785 = vpop.f32.mrf.mxu0
    %v786 = vadd.f32 %v767, %v785
    %787 = vmatmul.bf16.gmra.mxu0 %v456
    %v788 = vpop.f32.mrf.mxu0
    %v789 = vadd.f32 %v770, %v788
    %v790 = vpop.f32.mrf.mxu0
    %v791 = vadd.f32 %v772, %v790
    %792 = vdwg.mxu0
    %793 = vst [vmem:[#allocation2] sm:$0xff] %v784
    %794 = vst [vmem:[#allocation2 + $0x8] sm:$0xff] %v786
    %795 = vst [vmem:[#allocation2 + $0x10] sm:$0xff] %v789
    %796 = vst [vmem:[#allocation2 + $0x18] sm:$0xff] %v791
    // Predicated region
    $region22: #{ffn_forward.1} parent=1 // pred_check
      _
    $region23: #{ffn_forward.1} parent=1 // pred_check_branch
      %798 = sbr.rel (0) target = $region25
    $region24: #{ffn_forward.1} parent=1 // pred_region
      %800 = vsyncadd [#allocation3], 0
      %s801 = sshll.u32 [#allocation2], 4
      %s802 = int_to_ptr.vmem [resolvable:$true] %s801
      %s803 = sshll.u32 %s5, 4
      %s804 = int_to_ptr.hbm [resolvable:$true] %s803
      %809 = dma.vmem_to_hbm [thread:$0]  %s802, 512, %s804, [#allocation3], 128, 128, 8
    $region25: #{ffn_forward.1} parent=1 // pred_fallthru
      _
    // Predicated region
    $region26: #{ffn_forward.1} parent=1 // pred_check
      _
    $region27: #{ffn_forward.1} parent=1 // pred_check_branch
      %811 = sbr.rel (0) target = $region29
    $region28: #{ffn_forward.1} parent=1 // pred_region
      %813 = dma.done [#allocation3], 512
    $region29: #{ffn_forward.1} parent=1 // pred_fallthru
      _
    %814 = vsyncpa [#allocation3], 1

</llo_original>
